<compile_context>
chip_gen: v7x
topology: tpu7x:2x2x1
jax: 0.10.0
libtpu: 0.0.40
codegen_flags: <defaults>
</compile_context>

<pallas_src>
import functools

import jax
import jax.numpy as jnp
from jax.experimental import pallas as pl
from jax.experimental.pallas import tpu as pltpu

GAIN = 0.2
LEAKINESS = 0.2


def _round_up(v, m):
    return (v + m - 1) // m * m


def _from_rgb_kernel(x_ref, w_ref, b_ref, o_ref, *, leakiness):
    """Fused 1x1 conv + bias + leaky-relu on one (Cout, TM) output tile.

    x_ref : (Cin_pad, TM)       bf16   activations, M in the lane dim
    w_ref : (Cout_pad, Cin_pad) bf16   EqualLR-scaled weights
    b_ref : (Cout_pad, 1)       f32    bias
    o_ref : (Cout_pad, TM)      f32    lane-dense output tile
    """
    y = jnp.dot(w_ref[...], x_ref[...], preferred_element_type=jnp.float32)
    y = y + b_ref[...]                      # (Cout_pad, 1) broadcast over lanes
    y = jnp.where(y >= 0, y, y * leakiness)  # leaky ReLU fused in
    o_ref[...] = y.astype(o_ref.dtype)


def from_rgb(x_nchw, weight_oihw, bias, *, leakiness=LEAKINESS, gain=GAIN, tm=256):
    """FromRGB.forward: EqualLR 1x1 conv + leaky_relu.  NCHW in / NCHW out."""
    out_c, in_c, kh, kw = weight_oihw.shape
    assert kh == 1 and kw == 1, "FromRGB uses a 1x1 convolution"
    scale = (gain / (in_c * kh * kw)) ** 0.5

    n, c, h, w = x_nchw.shape
    assert c == in_c
    m = n * h * w

    # ---- XLA-side layout plumbing -------------------------------------
    # Activations: NCHW -> [Cin, M]  (M = n*H*W + h*W + w, lane-major).
    x_t = jnp.transpose(x_nchw, (1, 0, 2, 3)).reshape(c, m)

    cin_pad = _round_up(in_c, 8)        # sublane-align the contraction dim
    cout_pad = _round_up(out_c, 8)      # sublane-align the output-channel dim
    tm = max(128, _round_up(min(tm, _round_up(m, 128)), 128))  # lane-aligned tile
    m_pad = _round_up(m, tm)

    x_t = jnp.pad(x_t, ((0, cin_pad - in_c), (0, m_pad - m))).astype(jnp.bfloat16)

    # Weights: OIHW (1x1) -> [Cout, Cin], pre-scaled by the EqualLR scale.
    w_t = (weight_oihw.reshape(out_c, in_c) * scale)
    w_t = jnp.pad(w_t, ((0, cout_pad - out_c), (0, cin_pad - in_c))).astype(jnp.bfloat16)

    b2d = jnp.pad(bias.reshape(out_c, 1), ((0, cout_pad - out_c), (0, 0))).astype(jnp.float32)

    grid = (m_pad // tm,)

    out_t = pl.pallas_call(
        functools.partial(_from_rgb_kernel, leakiness=leakiness),
        out_shape=jax.ShapeDtypeStruct((cout_pad, m_pad), jnp.float32),
        grid_spec=pltpu.PrefetchScalarGridSpec(
            num_scalar_prefetch=0,
            grid=grid,
            in_specs=[
                pl.BlockSpec((cin_pad, tm), lambda i: (0, i)),       # activations
                pl.BlockSpec((cout_pad, cin_pad), lambda i: (0, 0)),  # weights (resident)
                pl.BlockSpec((cout_pad, 1), lambda i: (0, 0)),        # bias (resident)
            ],
            out_specs=pl.BlockSpec((cout_pad, tm), lambda i: (0, i)),
        ),
        compiler_params=pltpu.CompilerParams(
            dimension_semantics=("parallel",),   # megacore-shardable on v7x
        ),
    )(x_t, w_t, b2d)

    # [Cout_pad, M_pad] -> slice -> [Cout, N, H, W] -> NCHW
    out = out_t[:out_c, :m].reshape(out_c, n, h, w)
    return jnp.transpose(out, (1, 0, 2, 3))


if __name__ == "__main__":
    # FromRGB(out_channels=8): conv = EqualLRConv2d(3, 8, kernel_size=1)
    in_channels, out_channels = 3, 8
    n, hgt, wid = 2, 16, 16

    key = jax.random.PRNGKey(0)
    k_x, k_w = jax.random.split(key)

    # nn.init.normal_(weight), nn.init.zeros_(bias)
    weight = jax.random.normal(k_w, (out_channels, in_channels, 1, 1), jnp.float32)
    bias = jnp.zeros((out_channels,), jnp.float32)
    x = jax.random.normal(k_x, (n, in_channels, hgt, wid), jnp.float32)

    out = from_rgb(x, weight, bias)
    out = jax.block_until_ready(out)
    assert out.shape == (n, out_channels, hgt, wid)

    scale = (GAIN / (in_channels * 1 * 1)) ** 0.5
    w_scaled = weight[:, :, 0, 0] * scale                      # [Cout, Cin]

    # Reference 1: same bf16-rounded operands, f32 accumulation (kernel numerics).
    x_b = x.astype(jnp.bfloat16).astype(jnp.float32)
    w_b = w_scaled.astype(jnp.bfloat16).astype(jnp.float32)
    y_b = (x_b[:, None] * w_b[None, :, :, None, None]).sum(axis=2) \
        + bias[None, :, None, None]
    ref_bf16 = jnp.where(y_b >= 0, y_b, LEAKINESS * y_b)
    assert jnp.allclose(out, ref_bf16, atol=1e-4, rtol=1e-4), "mismatch vs bf16 reference"

    # Reference 2: full-precision PyTorch semantics (loose tol for bf16 I/O).
    y32 = (x[:, None] * w_scaled[None, :, :, None, None]).sum(axis=2) \
        + bias[None, :, None, None]
    ref_f32 = jnp.where(y32 >= 0, y32, LEAKINESS * y32)
    assert jnp.allclose(out, ref_f32, atol=5e-2, rtol=5e-2), "mismatch vs f32 reference"

    print("KERNEL_OK")
</pallas_src>

<mosaic_0001>
module attributes {stable_mosaic.version = 11 : i64} {
  func.func @_from_rgb_kernel(%arg0: i32, %arg1: memref<8x256xbf16, #tpu.memory_space<vmem>>, %arg2: memref<8x8xbf16, #tpu.memory_space<vmem>>, %arg3: memref<8x1xf32, #tpu.memory_space<vmem>>, %arg4: memref<8x256xf32, #tpu.memory_space<vmem>>) attributes {dimension_semantics = [#tpu.dimension_semantics<parallel>], iteration_bounds = array<i64: 2>, scalar_prefetch = 0 : i64, scratch_operands = 0 : i64, tpu.core_type = #tpu.core_type<tc>, window_params = [{transform_indices = @transform_0, window_bounds = array<i64: 8, 256>}, {pipeline_mode = #tpu.pipeline_mode<synchronous>, transform_indices = @transform_1, window_bounds = array<i64: 8, 8>}, {pipeline_mode = #tpu.pipeline_mode<synchronous>, transform_indices = @transform_2, window_bounds = array<i64: 8, 1>}, {transform_indices = @transform_3, window_bounds = array<i64: 8, 256>}]} {
    %c0 = arith.constant 0 : index
    %c0_0 = arith.constant 0 : index
    %0 = vector.load %arg2[%c0, %c0_0] : memref<8x8xbf16, #tpu.memory_space<vmem>>, vector<8x8xbf16>
    %c0_1 = arith.constant 0 : index
    %c0_2 = arith.constant 0 : index
    %1 = vector.load %arg1[%c0_1, %c0_2] : memref<8x256xbf16, #tpu.memory_space<vmem>>, vector<8x256xbf16>
    %cst = arith.constant dense<0.000000e+00> : vector<8x256xf32>
    %2 = tpu.matmul %0, %1, %cst {dimension_numbers = #tpu.dot_dimension_numbers<[1], [0], [0], [1], [0, 0, 1, 1], [], []>} : vector<8x8xbf16>, vector<8x256xbf16>, vector<8x256xf32> -> vector<8x256xf32>
    %c0_3 = arith.constant 0 : index
    %c0_4 = arith.constant 0 : index
    %3 = vector.load %arg3[%c0_3, %c0_4] : memref<8x1xf32, #tpu.memory_space<vmem>>, vector<8x1xf32>
    %4 = vector.broadcast %3 : vector<8x1xf32> to vector<8x256xf32>
    %5 = arith.addf %2, %4 : vector<8x256xf32>
    %cst_5 = arith.constant 0.000000e+00 : f32
    %6 = vector.broadcast %cst_5 : f32 to vector<8x256xf32>
    %7 = arith.cmpf oge, %5, %6 : vector<8x256xf32>
    %cst_6 = arith.constant 2.000000e-01 : f32
    %8 = vector.broadcast %cst_6 : f32 to vector<8x256xf32>
    %9 = arith.mulf %5, %8 : vector<8x256xf32>
    %10 = arith.select %7, %5, %9 : vector<8x256xi1>, vector<8x256xf32>
    %c0_7 = arith.constant 0 : index
    %c0_8 = arith.constant 0 : index
    %11 = vector.load %arg4[%c0_7, %c0_8] : memref<8x256xf32, #tpu.memory_space<vmem>>, vector<8x256xf32>
    tpu.vector_store %arg4[%c0_7, %c0_8], %10 {strides = array<i32>} : memref<8x256xf32, #tpu.memory_space<vmem>>, vector<8x256xf32>,
    return
  }
  func.func @transform_0(%arg0: i32) -> (i32, i32) {
    %c0_i32 = arith.constant 0 : i32
    %c0_i32_0 = arith.constant 0 : i32
    return %c0_i32, %arg0 : i32, i32
  }
  func.func @transform_1(%arg0: i32) -> (i32, i32) {
    %c0_i32 = arith.constant 0 : i32
    %c0_i32_0 = arith.constant 0 : i32
    %c0_i32_1 = arith.constant 0 : i32
    return %c0_i32, %c0_i32_0 : i32, i32
  }
  func.func @transform_2(%arg0: i32) -> (i32, i32) {
    %c0_i32 = arith.constant 0 : i32
    %c0_i32_0 = arith.constant 0 : i32
    %c0_i32_1 = arith.constant 0 : i32
    return %c0_i32, %c0_i32_0 : i32, i32
  }
  func.func @transform_3(%arg0: i32) -> (i32, i32) {
    %c0_i32 = arith.constant 0 : i32
    %c0_i32_0 = arith.constant 0 : i32
    return %c0_i32, %arg0 : i32, i32
  }
}

</mosaic_0001>

<llo_original>
// kernel: tpu_custom_call.1
$region0: #{tpu_custom_call.1}
  #allocation0 [shape = 'u32[]', space=smem, size = 0x4, offset = 0x4, fixed_abs, tag = 'smem constant byte address 0x4 - core index']
  #allocation1 [shape = 'u32[144,128]{1,0:T(1,128)}', space=vmem, size = 0x12000, scoped, tag = 'internal scratch']
  %s0 = inlined_call_operand.hbm [shape: bf16[8,512], index: 0, kind: input, shape index: {}]
  %s1 = inlined_call_operand.vmem [shape: bf16[8,8], index: 1, kind: input, shape index: {}]
  %s2 = inlined_call_operand.vmem [shape: f32[8,1], index: 2, kind: input, shape index: {}]
  %s3 = inlined_call_operand.hbm [shape: f32[8,512], index: 3, kind: output, shape index: {}]
  %s4 = sld [smem:[#allocation0]]
  $region49: #{tpu_custom_call.1} parent=0
    _
  %s6 = ssub.s32 1, %s4
  %s7 = scalar_select 0, %s6, %s4
  $region1: #{tpu_custom_call.1} parent=0
    #allocation2 [shape = 'u8[8192]{0}', space=vmem, size = 0x2000, scoped, tag = 'input window, operand 0']
    #allocation3 [shape = 's32[2]{0}', space=sflag, size = 0x8, scoped, tag = 'scoped memory for tpu_custom_call.1']
    #allocation4 [shape = 's32[2]{0}', space=sflag, size = 0x8, scoped, tag = 'scoped memory for tpu_custom_call.1']
    #allocation5 [shape = 'u8[16384]{0}', space=vmem, size = 0x4000, scoped, tag = 'output window, operand 0']
    %8 = vsyncpa [#allocation3], 0
    %s9 = scalar_lea.sflag [#allocation3], 1
    %10 = vsyncpa %s9, 0
    %11 = vsyncpa [#allocation4], 0
    %s12 = scalar_lea.sflag [#allocation4], 1
    %13 = vsyncpa %s12, 0
    loop: start=0, step=1, limit=4
    $region2: #{tpu_custom_call.1} parent=1 // loop_pre_header
      _
    $region3: #{tpu_custom_call.1} parent=1 // loop_header
      %s15 = sphi 0, %s19
      %p16 = scmp.ge.s32.totalorder %s15, 4
      %s25 = sphi 0, %s27
      %s28 = sphi 0, %s25
      %s29 = sphi 0, %s28
      %s45 = sphi 0, %s29
      %s49 = sphi 0, %s49
      %s51 = sphi 0, %s49
      %s52 = sphi 0, %s51
      %s66 = sphi 0, %s52
      %s70 = sphi 0, %s70
      %s72 = sphi 0, %s70
      %s73 = sphi 0, %s72
      %s87 = sphi 0, %s73
      %s93 = sphi 0, %s95
      %s96 = sphi 0, %s93
      %s97 = sphi 0, %s96
      %s113 = sphi 0, %s97
    $region4: #{tpu_custom_call.1} parent=1 // loop_header_branch
      %18 = sbr.rel (%p16) target = $region8
    $region5: #{tpu_custom_call.1} parent=1 // loop_body
      %s20 = ssub.s32 %s15, 1
      %s21 = ssub.s32 %s15, 2
      %s22 = sadd.s32 %s15, 1
      %s23 = ssub.s32 %s15, %s22
      %p24 = scmp.eq.s32.totalorder %s23, 0
      %s26 = sadd.s32 %s25, 1
      %s27 = scalar_select %p24, %s25, %s26
      %p30 = pneg %p24
      %p31 = scmp.eq.s32.totalorder %s15, 1
      %p32 = por %p30, %p31
      %p33 = scmp.ne.s32.totalorder %s25, %s28
      %p34 = scmp.eq.s32.totalorder %s15, 0
      %p35 = por %p33, %p34
      %p36 = scmp.ne.s32.totalorder %s25, %s28
      %p37 = scmp.eq.s32.totalorder %s20, 1
      %p38 = por %p36, %p37
      %p39 = scmp.ne.s32.totalorder %s28, %s29
      %p40 = scmp.eq.s32.totalorder %s20, 0
      %p41 = por %p39, %p40
      %p42 = scmp.ne.s32.totalorder %s28, %s29
      %p43 = scmp.eq.s32.totalorder %s21, 1
      %p44 = por %p42, %p43
      %p46 = scmp.ne.s32.totalorder %s29, %s45
      %p47 = scmp.eq.s32.totalorder %s21, 0
      %p48 = por %p46, %p47
      %s50 = sadd.s32 %s49, 1
      %p53 = scmp.eq.s32.totalorder %s15, 1
      %p54 = scmp.ne.s32.totalorder %s49, %s51
      %p55 = scmp.eq.s32.totalorder %s15, 0
      %p56 = por %p54, %p55
      %p57 = scmp.ne.s32.totalorder %s49, %s51
      %p58 = scmp.eq.s32.totalorder %s20, 1
      %p59 = por %p57, %p58
      %p60 = scmp.ne.s32.totalorder %s51, %s52
      %p61 = scmp.eq.s32.totalorder %s20, 0
      %p62 = por %p60, %p61
      %p63 = scmp.ne.s32.totalorder %s51, %s52
      %p64 = scmp.eq.s32.totalorder %s21, 1
      %p65 = por %p63, %p64
      %p67 = scmp.ne.s32.totalorder %s52, %s66
      %p68 = scmp.eq.s32.totalorder %s21, 0
      %p69 = por %p67, %p68
      %s71 = sadd.s32 %s70, 1
      %p74 = scmp.eq.s32.totalorder %s15, 1
      %p75 = scmp.ne.s32.totalorder %s70, %s72
      %p76 = scmp.eq.s32.totalorder %s15, 0
      %p77 = por %p75, %p76
      %p78 = scmp.ne.s32.totalorder %s70, %s72
      %p79 = scmp.eq.s32.totalorder %s20, 1
      %p80 = por %p78, %p79
      %p81 = scmp.ne.s32.totalorder %s72, %s73
      %p82 = scmp.eq.s32.totalorder %s20, 0
      %p83 = por %p81, %p82
      %p84 = scmp.ne.s32.totalorder %s72, %s73
      %p85 = scmp.eq.s32.totalorder %s21, 1
      %p86 = por %p84, %p85
      %p88 = scmp.ne.s32.totalorder %s73, %s87
      %p89 = scmp.eq.s32.totalorder %s21, 0
      %p90 = por %p88, %p89
      %s91 = ssub.s32 %s15, %s22
      %p92 = scmp.eq.s32.totalorder %s91, 0
      %s94 = sadd.s32 %s93, 1
      %s95 = scalar_select %p92, %s93, %s94
      %p98 = pneg %p92
      %p99 = scmp.eq.s32.totalorder %s15, 1
      %p100 = por %p98, %p99
      %p101 = scmp.ne.s32.totalorder %s93, %s96
      %p102 = scmp.eq.s32.totalorder %s15, 0
      %p103 = por %p101, %p102
      %p104 = scmp.ne.s32.totalorder %s93, %s96
      %p105 = scmp.eq.s32.totalorder %s20, 1
      %p106 = por %p104, %p105
      %p107 = scmp.ne.s32.totalorder %s96, %s97
      %p108 = scmp.eq.s32.totalorder %s20, 0
      %p109 = por %p107, %p108
      %p110 = scmp.ne.s32.totalorder %s96, %s97
      %p111 = scmp.eq.s32.totalorder %s21, 1
      %p112 = por %p110, %p111
      %p114 = scmp.ne.s32.totalorder %s97, %s113
      %p115 = scmp.eq.s32.totalorder %s21, 0
      %p116 = por %p114, %p115
      %p117 = scmp.le.s32.totalorder 1, %s15
      %p118 = scmp.lt.s32.totalorder %s15, 3
      %p119 = pnand %p117, %p118
      %p120 = pneg %p119
      // Predicated region
      $region9: #{tpu_custom_call.1} parent=5 // pred_check
        _
      $region10: #{tpu_custom_call.1} parent=5 // pred_check_branch
        %122 = sbr.rel (%p119) target = $region12
      $region11: #{tpu_custom_call.1} parent=5 // pred_region
        %s123 = ssub.s32 %s15, 1
        // Predicated region
        $region13: #{tpu_custom_call.1} parent=11 // pred_check
          %p124 = pneg %p62
        $region14: #{tpu_custom_call.1} parent=11 // pred_check_branch
          %126 = sbr.rel (%p124) target = $region16
        $region15: #{tpu_custom_call.1} parent=11 // pred_region
          _
        $region16: #{tpu_custom_call.1} parent=11 // pred_fallthru
          _
        // Predicated region
        $region17: #{tpu_custom_call.1} parent=11 // pred_check
          %p127 = pneg %p83
        $region18: #{tpu_custom_call.1} parent=11 // pred_check_branch
          %129 = sbr.rel (%p127) target = $region20
        $region19: #{tpu_custom_call.1} parent=11 // pred_region
          _
        $region20: #{tpu_custom_call.1} parent=11 // pred_fallthru
          _
      $region12: #{tpu_custom_call.1} parent=5 // pred_fallthru
        _
      %p130 = scmp.lt.s32.totalorder %s15, 2
      // Predicated region
      $region21: #{tpu_custom_call.1} parent=5 // pred_check
        %p131 = pneg %p130
      $region22: #{tpu_custom_call.1} parent=5 // pred_check_branch
        %133 = sbr.rel (%p131) target = $region24
      $region23: #{tpu_custom_call.1} parent=5 // pred_region
        // Predicated region
        $region25: #{tpu_custom_call.1} parent=23 // pred_check
          %p134 = pneg %p35
        $region26: #{tpu_custom_call.1} parent=23 // pred_check_branch
          %136 = sbr.rel (%p134) target = $region28
        $region27: #{tpu_custom_call.1} parent=23 // pred_region
          %s137 = sand.u32 %s25, 1
          %s138 = scalar_lea.sflag [#allocation3], %s137
          %s139 = sand.u32 %s25, 1
          %s140 = smul.addr %s139, 8
          %s141 = scalar_lea.vmem [#allocation2], %s140
          %s142 = smul.u32 2, %s15
          %s144 = ssub.s32 128, 128
          %145 = vsyncadd %s138, %s144
          %s146 = smul.addr %s142, 64
          %s147 = scalar_lea.hbm %s0, %s146
          %s149 = sshll.u32 %s141, 4
          %s150 = int_to_ptr.vmem [resolvable:$true] %s149
          %152 = dma.hbm_to_vmem [thread:$0]  %s147, 128, %s150, %s138
        $region28: #{tpu_custom_call.1} parent=23 // pred_fallthru
          _
      $region24: #{tpu_custom_call.1} parent=5 // pred_fallthru
        _
      %p153 = scmp.le.s32.totalorder 1, %s15
      %p154 = scmp.lt.s32.totalorder %s15, 3
      %p155 = pnand %p153, %p154
      %p156 = pneg %p155
      // Predicated region
      $region29: #{tpu_custom_call.1} parent=5 // pred_check
        _
      $region30: #{tpu_custom_call.1} parent=5 // pred_check_branch
        %158 = sbr.rel (%p155) target = $region32
      $region31: #{tpu_custom_call.1} parent=5 // pred_region
        %s159 = ssub.s32 %s15, 1
        %s160 = sand.u32 %s28, 1
        %s161 = scalar_lea.sflag [#allocation3], %s160
        %s162 = sand.u32 %s28, 1
        %s163 = smul.addr %s162, 8
        %s164 = scalar_lea.vmem [#allocation2], %s163
        // Predicated region
        $region33: #{tpu_custom_call.1} parent=31 // pred_check
          %p165 = pneg %p41
        $region34: #{tpu_custom_call.1} parent=31 // pred_check_branch
          %167 = sbr.rel (%p165) target = $region36
        $region35: #{tpu_custom_call.1} parent=31 // pred_region
          %168 = dma.done %s161, 128
        $region36: #{tpu_custom_call.1} parent=31 // pred_fallthru
          _
        %s169 = sand.u32 %s28, 1
        %s170 = scalar_lea.sflag [#allocation3], %s169
        %s171 = sand.u32 %s28, 1
        %s172 = smul.addr %s171, 8
        %s173 = scalar_lea.vmem [#allocation2], %s172
        %p174 = pneg %p41
        %p175 = pneg %p38
        %p176 = pneg %p62
        %p177 = pneg %p59
        %p178 = pneg %p83
        %p179 = pneg %p80
        %p180 = pneg %p109
        %p181 = pneg %p106
        %s182 = sand.u32 %s96, 1
        %s183 = scalar_lea.sflag [#allocation4], %s182
        %s184 = sand.u32 %s96, 1
        %s185 = smul.addr %s184, 16
        %s186 = scalar_lea.vmem [#allocation5], %s185
        %s187 = smul.u32 2, %s20
        %s188 = smul.u32 2, %s20
        %v190 = vld [vmem:[%s1] sm:$0xf]
        %v191 = vld [vmem:[%s164] sm:$0xff]
        %v192 = vld [vmem:[%s2] sm:$0xff]
        %194 = vset.pattern.permute.xlu0 0
        %195 = vperm.xlu0 %194, %v192
        %v196 = vpop.permute.xlu0 %195
        %v199 = vunpack.c.l.b16 %v191
        %v200 = vunpack.c.h.b16 %v191
        %v201 = vpack.c.b16 %v199, %v199
        %v202 = vpack.c.b16 %v200, %v200
        %vm203 = vcmask 64512
        %v205 = vsel %vm203, %v190, 0
        %vm207 = vcmask 1043456
        %v209 = vsel %vm207, %v201, 0
        %v212 = vsel %vm207, %v202, 0
        %214 = vmatprep.subr.bf16.mxu0 %v212
        %215 = vmatpush1.bf16.msra.mxu0 %v209
        %216 = vmatprep.subr.bf16.mxu0 0
        %217 = vmatpush1.bf16.msra.mxu0 0
        %218 = vmatprep.subr.bf16.mxu0 0
        %219 = vmatpush1.bf16.msra.mxu0 0
        %220 = vmatprep.subr.bf16.mxu0 0
        %221 = vmatpush1.bf16.msra.mxu0 0
        %222 = vmatprep.subr.bf16.mxu0 0
        %223 = vmatpush1.bf16.msra.mxu0 0
        %224 = vmatprep.subr.bf16.mxu0 0
        %225 = vmatpush1.bf16.msra.mxu0 0
        %226 = vmatprep.subr.bf16.mxu0 0
        %227 = vmatpush1.bf16.msra.mxu0 0
        %228 = vmatprep.subr.bf16.mxu0 0
        %229 = vmatpush1.bf16.msra.mxu0 0
        %230 = vmatprep.subr.bf16.mxu0 0
        %231 = vmatpush1.bf16.msra.mxu0 0
        %232 = vmatprep.subr.bf16.mxu0 0
        %233 = vmatpush1.bf16.msra.mxu0 0
        %234 = vmatprep.subr.bf16.mxu0 0
        %235 = vmatpush1.bf16.msra.mxu0 0
        %236 = vmatprep.subr.bf16.mxu0 0
        %237 = vmatpush1.bf16.msra.mxu0 0
        %238 = vmatprep.subr.bf16.mxu0 0
        %239 = vmatpush1.bf16.msra.mxu0 0
        %240 = vmatprep.subr.bf16.mxu0 0
        %241 = vmatpush1.bf16.msra.mxu0 0
        %242 = vmatprep.subr.bf16.mxu0 0
        %243 = vmatpush1.bf16.msra.mxu0 0
        %244 = vmatprep.subr.bf16.mxu0 0
        %245 = vmatpush1.bf16.msra.mxu0 0
        %246 = vmatprep.mubr.bf16.mxu0 0
        %247 = vmatmul.mubr.bf16.gmra.mrb[0].mxu0 %v205
        %v248 = vpop.f32.mrb[0].mxu0
        %v249 = vadd.f32 %v196, %v248
        %v250 = vpop.f32.mrb[0].mxu0
        %v251 = vadd.f32 %v196, %v250
        %v252 = vpop.f32.mrb[0].mxu0
        %v253 = vpop.f32.mrb[0].mxu0
        %254 = vdwg.mxu0
        %vm255 = vcmp.ge.f32.partialorder %v249, 0.0
        %vm256 = vcmp.ge.f32.partialorder %v251, 0.0
        %v257 = vmul.f32 %v249, 0.2
        %v258 = vmul.f32 %v251, 0.2
        %v259 = vsel %vm255, %v249, %v257
        %v260 = vsel %vm256, %v251, %v258
        %261 = vst [vmem:[%s186] sm:$0xff] %v259
        %262 = vst [vmem:[%s186 + $0x8] sm:$0xff] %v260
        %s263 = sand.u32 %s96, 1
        %s264 = scalar_lea.sflag [#allocation4], %s263
        %s265 = sand.u32 %s96, 1
        %s266 = smul.addr %s265, 16
        %s267 = scalar_lea.vmem [#allocation5], %s266
        // Predicated region
        $region37: #{tpu_custom_call.1} parent=31 // pred_check
          %p268 = pneg %p106
        $region38: #{tpu_custom_call.1} parent=31 // pred_check_branch
          %270 = sbr.rel (%p268) target = $region40
        $region39: #{tpu_custom_call.1} parent=31 // pred_region
          %s271 = smul.u32 2, %s20
          %s273 = ssub.s32 256, 256
          %274 = vsyncadd %s264, %s273
          %s275 = smul.addr %s271, 128
          %s276 = scalar_lea.hbm %s3, %s275
          %s278 = sshll.u32 %s267, 4
          %s279 = int_to_ptr.vmem [resolvable:$true] %s278
          %281 = dma.vmem_to_hbm [thread:$0]  %s279, 256, %s276, %s264
        $region40: #{tpu_custom_call.1} parent=31 // pred_fallthru
          _
      $region32: #{tpu_custom_call.1} parent=5 // pred_fallthru
        _
      %p282 = scmp.le.s32.totalorder 2, %s15
      // Predicated region
      $region41: #{tpu_custom_call.1} parent=5 // pred_check
        %p283 = pneg %p282
      $region42: #{tpu_custom_call.1} parent=5 // pred_check_branch
        %285 = sbr.rel (%p283) target = $region44
      $region43: #{tpu_custom_call.1} parent=5 // pred_region
        %s286 = ssub.s32 %s15, 2
        // Predicated region
        $region45: #{tpu_custom_call.1} parent=43 // pred_check
          %p287 = pneg %p112
        $region46: #{tpu_custom_call.1} parent=43 // pred_check_branch
          %289 = sbr.rel (%p287) target = $region48
        $region47: #{tpu_custom_call.1} parent=43 // pred_region
          %s290 = sand.u32 %s97, 1
          %s291 = scalar_lea.sflag [#allocation4], %s290
          %s292 = sand.u32 %s97, 1
          %s293 = smul.addr %s292, 16
          %s294 = scalar_lea.vmem [#allocation5], %s293
          %295 = dma.done %s291, 256
        $region48: #{tpu_custom_call.1} parent=43 // pred_fallthru
          _
      $region44: #{tpu_custom_call.1} parent=5 // pred_fallthru
        _
    $region6: #{tpu_custom_call.1} parent=1 // loop_footer
      %s19 = sadd.s32 1, %s15
    $region7: #{tpu_custom_call.1} parent=1 // loop_footer_branch
      %14 = sbr.rel target = $region3
    $region8: #{tpu_custom_call.1} parent=1 // loop_exit
      _
    %296 = vsyncpa [#allocation3], 1
    %s297 = scalar_lea.sflag [#allocation3], 1
    %298 = vsyncpa %s297, 1
    %299 = vsyncpa [#allocation4], 1
    %s300 = scalar_lea.sflag [#allocation4], 1
    %301 = vsyncpa %s300, 1

</llo_original>
